<compile_context>
chip_gen: v5e
topology: v5e:2x2
jax: 0.10.0
libtpu: 0.0.40
codegen_flags: <defaults>
</compile_context>

<pallas_src>
import jax
import jax.numpy as jnp
from jax.experimental import pallas as pl
from jax.experimental.pallas import tpu as pltpu

_HID = 128  # hidden dim (5) zero-padded to one full lane group


def _mlp_kernel(x_ref, w1_ref, b1_ref, w2_ref, b2_ref, o_ref):
    x = x_ref[...]                                                    # (TILE_N, C)
    # fc1 (hidden padded to 128 lanes): (TILE_N, C) @ (C, 128) + b1
    h = jnp.dot(x, w1_ref[...], preferred_element_type=jnp.float32) + b1_ref[...]
    h = jnp.maximum(h, 0.0)                                           # ReLU, (TILE_N, 128)
    # fc2 as VPU mul + XLU lane-reduce (padded w2 columns are zero).
    y = jnp.sum(h * w2_ref[...], axis=-1) + b2_ref[0, 0]              # (TILE_N,)
    # Sigmoid: exp and approximate reciprocal both run on the (otherwise idle) EUP.
    s = pl.reciprocal(1.0 + jnp.exp(-y), approx=True)
    # Lane-dense store: one (1, TILE_N) row per grid step.
    o_ref[...] = s.reshape(1, -1).astype(o_ref.dtype)


def mlp_forward(x, w1, b1, w2, b2, *, tile_rows=None):
    """Forward pass of MLP.

    x:  (N, C) float32
    w1: (5, C), b1: (5,)   -- PyTorch nn.Linear(C, 5) layout
    w2: (1, 5), b2: (1,)   -- PyTorch nn.Linear(5, 1) layout
    Returns (N, 1) float32.
    """
    n, c = x.shape
    hid = w1.shape[0]

    # ---- pack weights: pre-transpose, zero-pad hidden dim to 128 lanes ----
    w1_t = jnp.zeros((c, _HID), jnp.float32).at[:, :hid].set(w1.T.astype(jnp.float32))
    b1_p = jnp.zeros((1, _HID), jnp.float32).at[0, :hid].set(b1.astype(jnp.float32))
    w2_r = jnp.zeros((1, _HID), jnp.float32).at[0, :hid].set(w2[0].astype(jnp.float32))
    b2_s = jnp.asarray(b2, jnp.float32).reshape(1, 1)

    # ---- pick a batch tile: ~2 MiB of x per tile, multiple of 128, clamp [128, 2048] ----
    if tile_rows is None:
        tile_rows = (2 << 20) // (4 * c)
        tile_rows = max(128, min(2048, (tile_rows // 128) * 128))
    n_ceil128 = ((n + 127) // 128) * 128
    tile_rows = min(tile_rows, n_ceil128)

    # ---- pad batch to a multiple of the tile (padded rows are sliced away below) ----
    num_tiles = pl.cdiv(n, tile_rows)
    n_pad = num_tiles * tile_rows
    x_p = jnp.pad(x.astype(jnp.float32), ((0, n_pad - n), (0, 0))) if n_pad != n else x.astype(jnp.float32)

    out_row = pl.pallas_call(
        _mlp_kernel,
        out_shape=jax.ShapeDtypeStruct((1, n_pad), jnp.float32),
        grid_spec=pltpu.PrefetchScalarGridSpec(
            num_scalar_prefetch=0,
            grid=(num_tiles,),
            in_specs=[
                pl.BlockSpec((tile_rows, c), lambda i: (i, 0)),        # x tile (pipelined)
                pl.BlockSpec((c, _HID), lambda i: (0, 0)),             # W1^T (padded), resident
                pl.BlockSpec((1, _HID), lambda i: (0, 0)),             # b1 (padded)
                pl.BlockSpec((1, _HID), lambda i: (0, 0)),             # W2 row (padded)
                pl.BlockSpec(memory_space=pltpu.MemorySpace.SMEM),     # b2 scalar in SMEM
            ],
            out_specs=pl.BlockSpec((1, tile_rows), lambda i: (0, i)),  # lane-dense output row
        ),
        compiler_params=pltpu.CompilerParams(
            dimension_semantics=("parallel",),  # independent batch tiles -> megacore on v7x
        ),
    )(x_p, w1_t, b1_p, w2_r, b2_s)

    return out_row[0, :n].reshape(n, 1)


def init_mlp_params(key, channel):
    """Deterministic init mimicking PyTorch nn.Linear default (uniform +/- 1/sqrt(fan_in))."""
    k1, k2, k3, k4 = jax.random.split(key, 4)
    bound1 = 1.0 / (channel ** 0.5)
    w1 = jax.random.uniform(k1, (5, channel), jnp.float32, -bound1, bound1)  # (out=5, in=C)
    b1 = jax.random.uniform(k2, (5,), jnp.float32, -bound1, bound1)
    bound2 = 1.0 / (5.0 ** 0.5)
    w2 = jax.random.uniform(k3, (1, 5), jnp.float32, -bound2, bound2)        # (out=1, in=5)
    b2 = jax.random.uniform(k4, (1,), jnp.float32, -bound2, bound2)
    return w1, b1, w2, b2


if __name__ == "__main__":
    key = jax.random.PRNGKey(0)
    kx, kp = jax.random.split(key)

    batch = 200      # deliberately not a multiple of 128 to exercise the padded tail
    channel = 32
    x = jax.random.normal(kx, (batch, channel), dtype=jnp.float32)

    w1, b1, w2, b2 = init_mlp_params(kp, channel)

    out = mlp_forward(x, w1, b1, w2, b2)
    out = jax.block_until_ready(out)

    # reference check in plain JAX (approx=True reciprocal -> slightly looser tolerance)
    ref = jax.nn.sigmoid(jnp.maximum(x @ w1.T + b1, 0.0) @ w2.T + b2)
    assert out.shape == (batch, 1)
    assert jnp.allclose(out, ref, atol=1e-3, rtol=1e-3)

    print("KERNEL_OK")
</pallas_src>

<mosaic_0001>
module attributes {stable_mosaic.version = 11 : i64} {
  func.func @_mlp_kernel(%arg0: i32, %arg1: memref<256x32xf32, #tpu.memory_space<vmem>>, %arg2: memref<32x128xf32, #tpu.memory_space<vmem>>, %arg3: memref<1x128xf32, #tpu.memory_space<vmem>>, %arg4: memref<1x128xf32, #tpu.memory_space<vmem>>, %arg5: memref<1x1xf32, #tpu.memory_space<smem>>, %arg6: memref<1x256xf32, #tpu.memory_space<vmem>>) attributes {dimension_semantics = [#tpu.dimension_semantics<parallel>], iteration_bounds = array<i64: 1>, scalar_prefetch = 0 : i64, scratch_operands = 0 : i64, tpu.core_type = #tpu.core_type<tc>, window_params = [{transform_indices = @transform_0, window_bounds = array<i64: 256, 32>}, {pipeline_mode = #tpu.pipeline_mode<synchronous>, transform_indices = @transform_1, window_bounds = array<i64: 32, 128>}, {pipeline_mode = #tpu.pipeline_mode<synchronous>, transform_indices = @transform_2, window_bounds = array<i64: 1, 128>}, {pipeline_mode = #tpu.pipeline_mode<synchronous>, transform_indices = @transform_3, window_bounds = array<i64: 1, 128>}, {transform_indices = @transform_4, window_bounds = array<i64: 1, 1>}, {transform_indices = @transform_5, window_bounds = array<i64: 1, 256>}]} {
    %c0 = arith.constant 0 : index
    %c0_0 = arith.constant 0 : index
    %0 = vector.load %arg1[%c0, %c0_0] : memref<256x32xf32, #tpu.memory_space<vmem>>, vector<256x32xf32>
    %c0_1 = arith.constant 0 : index
    %c0_2 = arith.constant 0 : index
    %1 = vector.load %arg2[%c0_1, %c0_2] : memref<32x128xf32, #tpu.memory_space<vmem>>, vector<32x128xf32>
    %cst = arith.constant dense<0.000000e+00> : vector<256x128xf32>
    %2 = tpu.matmul %0, %1, %cst {dimension_numbers = #tpu.dot_dimension_numbers<[1], [0], [0], [1], [0, 0, 1, 1], [], []>} : vector<256x32xf32>, vector<32x128xf32>, vector<256x128xf32> -> vector<256x128xf32>
    %c0_3 = arith.constant 0 : index
    %c0_4 = arith.constant 0 : index
    %3 = vector.load %arg3[%c0_3, %c0_4] : memref<1x128xf32, #tpu.memory_space<vmem>>, vector<1x128xf32>
    %4 = vector.broadcast %3 : vector<1x128xf32> to vector<256x128xf32>
    %5 = arith.addf %2, %4 : vector<256x128xf32>
    %cst_5 = arith.constant 0.000000e+00 : f32
    %6 = vector.broadcast %cst_5 : f32 to vector<256x128xf32>
    %7 = arith.maximumf %5, %6 : vector<256x128xf32>
    %c0_6 = arith.constant 0 : index
    %c0_7 = arith.constant 0 : index
    %8 = vector.load %arg4[%c0_6, %c0_7] : memref<1x128xf32, #tpu.memory_space<vmem>>, vector<1x128xf32>
    %9 = vector.broadcast %8 : vector<1x128xf32> to vector<256x128xf32>
    %10 = arith.mulf %7, %9 : vector<256x128xf32>
    %cst_8 = arith.constant dense<0.000000e+00> : vector<256xf32>
    %11 = vector.multi_reduction <add>, %10, %cst_8 [1] : vector<256x128xf32> to vector<256xf32>
    %c0_9 = arith.constant 0 : index
    %c0_10 = arith.constant 0 : index
    %12 = memref.load %arg5[%c0_9, %c0_10] : memref<1x1xf32, #tpu.memory_space<smem>>
    %13 = vector.broadcast %12 : f32 to vector<256xf32>
    %14 = arith.addf %11, %13 : vector<256xf32>
    %cst_11 = arith.constant 0.000000e+00 : f32
    %15 = vector.broadcast %cst_11 : f32 to vector<256xf32>
    %16 = arith.subf %15, %14 : vector<256xf32>
    %17 = math.exp %16 : vector<256xf32>
    %cst_12 = arith.constant 1.000000e+00 : f32
    %18 = vector.broadcast %cst_12 : f32 to vector<256xf32>
    %19 = arith.addf %18, %17 : vector<256xf32>
    %20 = tpu.reciprocal %19 {approx = true} : vector<256xf32> -> vector<256xf32>
    %21 = vector.shape_cast %20 : vector<256xf32> to vector<1x256xf32>
    %c0_13 = arith.constant 0 : index
    %c0_14 = arith.constant 0 : index
    %22 = vector.load %arg6[%c0_13, %c0_14] : memref<1x256xf32, #tpu.memory_space<vmem>>, vector<1x256xf32>
    tpu.vector_store %arg6[%c0_13, %c0_14], %21 {strides = array<i32>} : memref<1x256xf32, #tpu.memory_space<vmem>>, vector<1x256xf32>,
    return
  }
  func.func @transform_0(%arg0: i32) -> (i32, i32) {
    %c0_i32 = arith.constant 0 : i32
    %c0_i32_0 = arith.constant 0 : i32
    return %arg0, %c0_i32 : i32, i32
  }
  func.func @transform_1(%arg0: i32) -> (i32, i32) {
    %c0_i32 = arith.constant 0 : i32
    %c0_i32_0 = arith.constant 0 : i32
    %c0_i32_1 = arith.constant 0 : i32
    return %c0_i32, %c0_i32_0 : i32, i32
  }
  func.func @transform_2(%arg0: i32) -> (i32, i32) {
    %c0_i32 = arith.constant 0 : i32
    %c0_i32_0 = arith.constant 0 : i32
    %c0_i32_1 = arith.constant 0 : i32
    return %c0_i32, %c0_i32_0 : i32, i32
  }
  func.func @transform_3(%arg0: i32) -> (i32, i32) {
    %c0_i32 = arith.constant 0 : i32
    %c0_i32_0 = arith.constant 0 : i32
    %c0_i32_1 = arith.constant 0 : i32
    return %c0_i32, %c0_i32_0 : i32, i32
  }
  func.func @transform_4(%arg0: i32) -> (i32, i32) {
    %c0_i32 = arith.constant 0 : i32
    %c0_i32_0 = arith.constant 0 : i32
    %c0_i32_1 = arith.constant 0 : i32
    return %c0_i32, %c0_i32_0 : i32, i32
  }
  func.func @transform_5(%arg0: i32) -> (i32, i32) {
    %c0_i32 = arith.constant 0 : i32
    %c0_i32_0 = arith.constant 0 : i32
    return %c0_i32, %arg0 : i32, i32
  }
}

</mosaic_0001>

<llo_original>
// kernel: tpu_custom_call.1
$region0: #{tpu_custom_call.1}
  #allocation0 [shape = 'u32[]', space=smem, size = 0x4, offset = 0x4, fixed_abs, tag = 'smem constant byte address 0x4 - core index']
  #allocation1 [shape = 'u32[72,128]{1,0:T(1,128)}', space=vmem, size = 0x9000, scoped, tag = 'internal scratch']
  #allocation2 [shape = 'f32[1,1]{1,0:T(1,128)S(6)}', space=smem, size = 0x200, scoped, tag = 'scoped memory for tpu_custom_call.1']
  %s0 = inlined_call_operand.vmem [shape: f32[256,32], index: 0, kind: input, shape index: {}]
  %s1 = inlined_call_operand.vmem [shape: f32[32,128], index: 1, kind: input, shape index: {}]
  %s2 = inlined_call_operand.vmem [shape: f32[1,128], index: 2, kind: input, shape index: {}]
  %s3 = inlined_call_operand.vmem [shape: f32[1,128], index: 3, kind: input, shape index: {}]
  %s4 = inlined_call_operand.<no memory space> [shape: f32[1,1], index: 4, kind: input, shape index: {}]
  %s5 = inlined_call_operand.hbm [shape: f32[1,256], index: 5, kind: output, shape index: {}]
  %s6 = sld [smem:[#allocation0]]
  $region30: #{tpu_custom_call.1} parent=0
    _
  %s8 = ssub.s32 1, %s6
  %s9 = scalar_select 0, %s8, %s6
  %10 = sst [smem:[#allocation2]] %s4
  $region1: #{tpu_custom_call.1} parent=0
    #allocation3 [shape = 'u8[1024]{0}', space=vmem, size = 0x400, scoped, tag = 'output window, operand 0, single buffered']
    #allocation4 [shape = 's32[1]{0}', space=sflag, size = 0x4, scoped, tag = 'scoped memory for tpu_custom_call.1']
    %11 = vsyncpa [#allocation4], 0
    // Predicated region
    $region2: #{tpu_custom_call.1} parent=1 // pred_check
      _
    $region3: #{tpu_custom_call.1} parent=1 // pred_check_branch
      %13 = sbr.rel (0) target = $region5
    $region4: #{tpu_custom_call.1} parent=1 // pred_region
      _
    $region5: #{tpu_custom_call.1} parent=1 // pred_fallthru
      _
    // Predicated region
    $region6: #{tpu_custom_call.1} parent=1 // pred_check
      _
    $region7: #{tpu_custom_call.1} parent=1 // pred_check_branch
      %15 = sbr.rel (0) target = $region9
    $region8: #{tpu_custom_call.1} parent=1 // pred_region
      _
    $region9: #{tpu_custom_call.1} parent=1 // pred_fallthru
      _
    // Predicated region
    $region10: #{tpu_custom_call.1} parent=1 // pred_check
      _
    $region11: #{tpu_custom_call.1} parent=1 // pred_check_branch
      %17 = sbr.rel (0) target = $region13
    $region12: #{tpu_custom_call.1} parent=1 // pred_region
      _
    $region13: #{tpu_custom_call.1} parent=1 // pred_fallthru
      _
    // Predicated region
    $region14: #{tpu_custom_call.1} parent=1 // pred_check
      _
    $region15: #{tpu_custom_call.1} parent=1 // pred_check_branch
      %19 = sbr.rel (0) target = $region17
    $region16: #{tpu_custom_call.1} parent=1 // pred_region
      _
    $region17: #{tpu_custom_call.1} parent=1 // pred_fallthru
      _
    // Predicated region
    $region18: #{tpu_custom_call.1} parent=1 // pred_check
      _
    $region19: #{tpu_custom_call.1} parent=1 // pred_check_branch
      %21 = sbr.rel (0) target = $region21
    $region20: #{tpu_custom_call.1} parent=1 // pred_region
      _
    $region21: #{tpu_custom_call.1} parent=1 // pred_fallthru
      _
    %v22 = vld [vmem:[%s0] sm:$0xff]
    %v23 = vld [vmem:[%s0 + $0x8] sm:$0xff]
    %v24 = vld [vmem:[%s0 + $0x10] sm:$0xff]
    %v25 = vld [vmem:[%s0 + $0x18] sm:$0xff]
    %v26 = vld [vmem:[%s0 + $0x20] sm:$0xff]
    %v27 = vld [vmem:[%s0 + $0x28] sm:$0xff]
    %v28 = vld [vmem:[%s0 + $0x30] sm:$0xff]
    %v29 = vld [vmem:[%s0 + $0x38] sm:$0xff]
    %v30 = vld [vmem:[%s0 + $0x40] sm:$0xff]
    %v31 = vld [vmem:[%s0 + $0x48] sm:$0xff]
    %v32 = vld [vmem:[%s0 + $0x50] sm:$0xff]
    %v33 = vld [vmem:[%s0 + $0x58] sm:$0xff]
    %v34 = vld [vmem:[%s0 + $0x60] sm:$0xff]
    %v35 = vld [vmem:[%s0 + $0x68] sm:$0xff]
    %v36 = vld [vmem:[%s0 + $0x70] sm:$0xff]
    %v37 = vld [vmem:[%s0 + $0x78] sm:$0xff]
    %v38 = vld [vmem:[%s0 + $0x80] sm:$0xff]
    %v39 = vld [vmem:[%s0 + $0x88] sm:$0xff]
    %v40 = vld [vmem:[%s0 + $0x90] sm:$0xff]
    %v41 = vld [vmem:[%s0 + $0x98] sm:$0xff]
    %v42 = vld [vmem:[%s0 + $0xa0] sm:$0xff]
    %v43 = vld [vmem:[%s0 + $0xa8] sm:$0xff]
    %v44 = vld [vmem:[%s0 + $0xb0] sm:$0xff]
    %v45 = vld [vmem:[%s0 + $0xb8] sm:$0xff]
    %v46 = vld [vmem:[%s0 + $0xc0] sm:$0xff]
    %v47 = vld [vmem:[%s0 + $0xc8] sm:$0xff]
    %v48 = vld [vmem:[%s0 + $0xd0] sm:$0xff]
    %v49 = vld [vmem:[%s0 + $0xd8] sm:$0xff]
    %v50 = vld [vmem:[%s0 + $0xe0] sm:$0xff]
    %v51 = vld [vmem:[%s0 + $0xe8] sm:$0xff]
    %v52 = vld [vmem:[%s0 + $0xf0] sm:$0xff]
    %v53 = vld [vmem:[%s0 + $0xf8] sm:$0xff]
    %v54 = vld [vmem:[%s1] sm:$0xff]
    %v55 = vld [vmem:[%s1 + $0x8] sm:$0xff]
    %v56 = vld [vmem:[%s1 + $0x10] sm:$0xff]
    %v57 = vld [vmem:[%s1 + $0x18] sm:$0xff]
    %v58 = vld [vmem:[%s2] sm:$0x1]
    %v60 = vperm.slane %v58, 0
    %vm62 = vcmask 261120
    %v64 = vsel %vm62, %v22, 0
    %v67 = vsel %vm62, %v23, 0
    %v70 = vsel %vm62, %v24, 0
    %v73 = vsel %vm62, %v25, 0
    %v76 = vsel %vm62, %v26, 0
    %v79 = vsel %vm62, %v27, 0
    %v82 = vsel %vm62, %v28, 0
    %v85 = vsel %vm62, %v29, 0
    %v88 = vsel %vm62, %v30, 0
    %v91 = vsel %vm62, %v31, 0
    %v94 = vsel %vm62, %v32, 0
    %v97 = vsel %vm62, %v33, 0
    %v100 = vsel %vm62, %v34, 0
    %v103 = vsel %vm62, %v35, 0
    %v106 = vsel %vm62, %v36, 0
    %v109 = vsel %vm62, %v37, 0
    %v112 = vsel %vm62, %v38, 0
    %v115 = vsel %vm62, %v39, 0
    %v118 = vsel %vm62, %v40, 0
    %v121 = vsel %vm62, %v41, 0
    %v124 = vsel %vm62, %v42, 0
    %v127 = vsel %vm62, %v43, 0
    %v130 = vsel %vm62, %v44, 0
    %v133 = vsel %vm62, %v45, 0
    %v136 = vsel %vm62, %v46, 0
    %v139 = vsel %vm62, %v47, 0
    %v142 = vsel %vm62, %v48, 0
    %v145 = vsel %vm62, %v49, 0
    %v148 = vsel %vm62, %v50, 0
    %v151 = vsel %vm62, %v51, 0
    %v154 = vsel %vm62, %v52, 0
    %v157 = vsel %vm62, %v53, 0
    %159 = vmatpush.msra.mxu0 0.0
    %160 = vmatpush.msra.mxu0 0.0
    %161 = vmatpush.msra.mxu0 0.0
    %162 = vmatpush.msra.mxu0 0.0
    %163 = vmatpush.msra.mxu0 0.0
    %164 = vmatpush.msra.mxu0 0.0
    %165 = vmatpush.msra.mxu0 0.0
    %166 = vmatpush.msra.mxu0 0.0
    %167 = vmatpush.msra.mxu0 0.0
    %168 = vmatpush.msra.mxu0 0.0
    %169 = vmatpush.msra.mxu0 0.0
    %170 = vmatpush.msra.mxu0 0.0
    %171 = vmatpush.msra.mxu0 %v57
    %172 = vmatpush.msra.mxu0 %v56
    %173 = vmatpush.msra.mxu0 %v55
    %174 = vmatpush.msra.mxu0 %v54
    %175 = vmatmul.f32.gmra.mxu0 %v64
    %v176 = vpop.f32.mrf.mxu0
    %v177 = vadd.f32 %v60, %v176
    %178 = vmatmul.f32.gmra.mxu0 %v67
    %v179 = vpop.f32.mrf.mxu0
    %v180 = vadd.f32 %v60, %v179
    %181 = vmatmul.f32.gmra.mxu0 %v70
    %v182 = vpop.f32.mrf.mxu0
    %v183 = vadd.f32 %v60, %v182
    %184 = vmatmul.f32.gmra.mxu0 %v73
    %v185 = vpop.f32.mrf.mxu0
    %v186 = vadd.f32 %v60, %v185
    %187 = vmatmul.f32.gmra.mxu0 %v76
    %v188 = vpop.f32.mrf.mxu0
    %v189 = vadd.f32 %v60, %v188
    %190 = vmatmul.f32.gmra.mxu0 %v79
    %v191 = vpop.f32.mrf.mxu0
    %v192 = vadd.f32 %v60, %v191
    %193 = vmatmul.f32.gmra.mxu0 %v82
    %v194 = vpop.f32.mrf.mxu0
    %v195 = vadd.f32 %v60, %v194
    %196 = vmatmul.f32.gmra.mxu0 %v85
    %v197 = vpop.f32.mrf.mxu0
    %v198 = vadd.f32 %v60, %v197
    %199 = vmatmul.f32.gmra.mxu0 %v88
    %v200 = vpop.f32.mrf.mxu0
    %v201 = vadd.f32 %v60, %v200
    %202 = vmatmul.f32.gmra.mxu0 %v91
    %v203 = vpop.f32.mrf.mxu0
    %v204 = vadd.f32 %v60, %v203
    %205 = vmatmul.f32.gmra.mxu0 %v94
    %v206 = vpop.f32.mrf.mxu0
    %v207 = vadd.f32 %v60, %v206
    %208 = vmatmul.f32.gmra.mxu0 %v97
    %v209 = vpop.f32.mrf.mxu0
    %v210 = vadd.f32 %v60, %v209
    %211 = vmatmul.f32.gmra.mxu0 %v100
    %v212 = vpop.f32.mrf.mxu0
    %v213 = vadd.f32 %v60, %v212
    %214 = vmatmul.f32.gmra.mxu0 %v103
    %v215 = vpop.f32.mrf.mxu0
    %v216 = vadd.f32 %v60, %v215
    %217 = vmatmul.f32.gmra.mxu0 %v106
    %v218 = vpop.f32.mrf.mxu0
    %v219 = vadd.f32 %v60, %v218
    %220 = vmatmul.f32.gmra.mxu0 %v109
    %v221 = vpop.f32.mrf.mxu0
    %v222 = vadd.f32 %v60, %v221
    %223 = vmatmul.f32.gmra.mxu0 %v112
    %v224 = vpop.f32.mrf.mxu0
    %v225 = vadd.f32 %v60, %v224
    %226 = vmatmul.f32.gmra.mxu0 %v115
    %v227 = vpop.f32.mrf.mxu0
    %v228 = vadd.f32 %v60, %v227
    %229 = vmatmul.f32.gmra.mxu0 %v118
    %v230 = vpop.f32.mrf.mxu0
    %v231 = vadd.f32 %v60, %v230
    %232 = vmatmul.f32.gmra.mxu0 %v121
    %v233 = vpop.f32.mrf.mxu0
    %v234 = vadd.f32 %v60, %v233
    %235 = vmatmul.f32.gmra.mxu0 %v124
    %v236 = vpop.f32.mrf.mxu0
    %v237 = vadd.f32 %v60, %v236
    %238 = vmatmul.f32.gmra.mxu0 %v127
    %v239 = vpop.f32.mrf.mxu0
    %v240 = vadd.f32 %v60, %v239
    %241 = vmatmul.f32.gmra.mxu0 %v130
    %v242 = vpop.f32.mrf.mxu0
    %v243 = vadd.f32 %v60, %v242
    %244 = vmatmul.f32.gmra.mxu0 %v133
    %v245 = vpop.f32.mrf.mxu0
    %v246 = vadd.f32 %v60, %v245
    %247 = vmatmul.f32.gmra.mxu0 %v136
    %v248 = vpop.f32.mrf.mxu0
    %v249 = vadd.f32 %v60, %v248
    %250 = vmatmul.f32.gmra.mxu0 %v139
    %v251 = vpop.f32.mrf.mxu0
    %v252 = vadd.f32 %v60, %v251
    %253 = vmatmul.f32.gmra.mxu0 %v142
    %v254 = vpop.f32.mrf.mxu0
    %v255 = vadd.f32 %v60, %v254
    %256 = vmatmul.f32.gmra.mxu0 %v145
    %v257 = vpop.f32.mrf.mxu0
    %v258 = vadd.f32 %v60, %v257
    %259 = vmatmul.f32.gmra.mxu0 %v148
    %v260 = vpop.f32.mrf.mxu0
    %v261 = vadd.f32 %v60, %v260
    %262 = vmatmul.f32.gmra.mxu0 %v151
    %v263 = vpop.f32.mrf.mxu0
    %v264 = vadd.f32 %v60, %v263
    %265 = vmatmul.f32.gmra.mxu0 %v154
    %v266 = vpop.f32.mrf.mxu0
    %v267 = vadd.f32 %v60, %v266
    %268 = vmatmul.f32.gmra.mxu0 %v157
    %v269 = vpop.f32.mrf.mxu0
    %v270 = vadd.f32 %v60, %v269
    %271 = vdwg.mxu0
    %v272 = vmax.f32 %v177, 0.0
    %v273 = vmax.f32 %v180, 0.0
    %v274 = vmax.f32 %v183, 0.0
    %v275 = vmax.f32 %v186, 0.0
    %v276 = vmax.f32 %v189, 0.0
    %v277 = vmax.f32 %v192, 0.0
    %v278 = vmax.f32 %v195, 0.0
    %v279 = vmax.f32 %v198, 0.0
    %v280 = vmax.f32 %v201, 0.0
    %v281 = vmax.f32 %v204, 0.0
    %v282 = vmax.f32 %v207, 0.0
    %v283 = vmax.f32 %v210, 0.0
    %v284 = vmax.f32 %v213, 0.0
    %v285 = vmax.f32 %v216, 0.0
    %v286 = vmax.f32 %v219, 0.0
    %v287 = vmax.f32 %v222, 0.0
    %v288 = vmax.f32 %v225, 0.0
    %v289 = vmax.f32 %v228, 0.0
    %v290 = vmax.f32 %v231, 0.0
    %v291 = vmax.f32 %v234, 0.0
    %v292 = vmax.f32 %v237, 0.0
    %v293 = vmax.f32 %v240, 0.0
    %v294 = vmax.f32 %v243, 0.0
    %v295 = vmax.f32 %v246, 0.0
    %v296 = vmax.f32 %v249, 0.0
    %v297 = vmax.f32 %v252, 0.0
    %v298 = vmax.f32 %v255, 0.0
    %v299 = vmax.f32 %v258, 0.0
    %v300 = vmax.f32 %v261, 0.0
    %v301 = vmax.f32 %v264, 0.0
    %v302 = vmax.f32 %v267, 0.0
    %v303 = vmax.f32 %v270, 0.0
    %v304 = vld [vmem:[%s3] sm:$0x1]
    %v306 = vperm.slane %v304, 0
    %v308 = vmul.f32 %v272, %v306
    %v309 = vmul.f32 %v273, %v306
    %v310 = vmul.f32 %v274, %v306
    %v311 = vmul.f32 %v275, %v306
    %v312 = vmul.f32 %v276, %v306
    %v313 = vmul.f32 %v277, %v306
    %v314 = vmul.f32 %v278, %v306
    %v315 = vmul.f32 %v279, %v306
    %v316 = vmul.f32 %v280, %v306
    %v317 = vmul.f32 %v281, %v306
    %v318 = vmul.f32 %v282, %v306
    %v319 = vmul.f32 %v283, %v306
    %v320 = vmul.f32 %v284, %v306
    %v321 = vmul.f32 %v285, %v306
    %v322 = vmul.f32 %v286, %v306
    %v323 = vmul.f32 %v287, %v306
    %v324 = vmul.f32 %v288, %v306
    %v325 = vmul.f32 %v289, %v306
    %v326 = vmul.f32 %v290, %v306
    %v327 = vmul.f32 %v291, %v306
    %v328 = vmul.f32 %v292, %v306
    %v329 = vmul.f32 %v293, %v306
    %v330 = vmul.f32 %v294, %v306
    %v331 = vmul.f32 %v295, %v306
    %v332 = vmul.f32 %v296, %v306
    %v333 = vmul.f32 %v297, %v306
    %v334 = vmul.f32 %v298, %v306
    %v335 = vmul.f32 %v299, %v306
    %v336 = vmul.f32 %v300, %v306
    %v337 = vmul.f32 %v301, %v306
    %v338 = vmul.f32 %v302, %v306
    %v339 = vmul.f32 %v303, %v306
    %340 = vadd.xlane.f32.xlu0 %v308
    %v341 = vpop.xlane.xlu0 %340
    %342 = vadd.xlane.f32.xlu0 %v309
    %v343 = vpop.xlane.xlu0 %342
    %344 = vadd.xlane.f32.xlu0 %v310
    %v345 = vpop.xlane.xlu0 %344
    %346 = vadd.xlane.f32.xlu0 %v311
    %v347 = vpop.xlane.xlu0 %346
    %348 = vadd.xlane.f32.xlu0 %v312
    %v349 = vpop.xlane.xlu0 %348
    %350 = vadd.xlane.f32.xlu0 %v313
    %v351 = vpop.xlane.xlu0 %350
    %352 = vadd.xlane.f32.xlu0 %v314
    %v353 = vpop.xlane.xlu0 %352
    %354 = vadd.xlane.f32.xlu0 %v315
    %v355 = vpop.xlane.xlu0 %354
    %356 = vadd.xlane.f32.xlu0 %v316
    %v357 = vpop.xlane.xlu0 %356
    %358 = vadd.xlane.f32.xlu0 %v317
    %v359 = vpop.xlane.xlu0 %358
    %360 = vadd.xlane.f32.xlu0 %v318
    %v361 = vpop.xlane.xlu0 %360
    %362 = vadd.xlane.f32.xlu0 %v319
    %v363 = vpop.xlane.xlu0 %362
    %364 = vadd.xlane.f32.xlu0 %v320
    %v365 = vpop.xlane.xlu0 %364
    %366 = vadd.xlane.f32.xlu0 %v321
    %v367 = vpop.xlane.xlu0 %366
    %368 = vadd.xlane.f32.xlu0 %v322
    %v369 = vpop.xlane.xlu0 %368
    %370 = vadd.xlane.f32.xlu0 %v323
    %v371 = vpop.xlane.xlu0 %370
    %372 = vadd.xlane.f32.xlu0 %v324
    %v373 = vpop.xlane.xlu0 %372
    %374 = vadd.xlane.f32.xlu0 %v325
    %v375 = vpop.xlane.xlu0 %374
    %376 = vadd.xlane.f32.xlu0 %v326
    %v377 = vpop.xlane.xlu0 %376
    %378 = vadd.xlane.f32.xlu0 %v327
    %v379 = vpop.xlane.xlu0 %378
    %380 = vadd.xlane.f32.xlu0 %v328
    %v381 = vpop.xlane.xlu0 %380
    %382 = vadd.xlane.f32.xlu0 %v329
    %v383 = vpop.xlane.xlu0 %382
    %384 = vadd.xlane.f32.xlu0 %v330
    %v385 = vpop.xlane.xlu0 %384
    %386 = vadd.xlane.f32.xlu0 %v331
    %v387 = vpop.xlane.xlu0 %386
    %388 = vadd.xlane.f32.xlu0 %v332
    %v389 = vpop.xlane.xlu0 %388
    %390 = vadd.xlane.f32.xlu0 %v333
    %v391 = vpop.xlane.xlu0 %390
    %392 = vadd.xlane.f32.xlu0 %v334
    %v393 = vpop.xlane.xlu0 %392
    %394 = vadd.xlane.f32.xlu0 %v335
    %v395 = vpop.xlane.xlu0 %394
    %396 = vadd.xlane.f32.xlu0 %v336
    %v397 = vpop.xlane.xlu0 %396
    %398 = vadd.xlane.f32.xlu0 %v337
    %v399 = vpop.xlane.xlu0 %398
    %400 = vadd.xlane.f32.xlu0 %v338
    %v401 = vpop.xlane.xlu0 %400
    %402 = vadd.xlane.f32.xlu0 %v339
    %v403 = vpop.xlane.xlu0 %402
    %s404 = sld [smem:[#allocation2]]
    %v405 = vstv %s404
    %v406 = vadd.f32 %v341, %v405
    %v407 = vadd.f32 %v343, %v405
    %v408 = vadd.f32 %v345, %v405
    %v409 = vadd.f32 %v347, %v405
    %v410 = vadd.f32 %v349, %v405
    %v411 = vadd.f32 %v351, %v405
    %v412 = vadd.f32 %v353, %v405
    %v413 = vadd.f32 %v355, %v405
    %v414 = vadd.f32 %v357, %v405
    %v415 = vadd.f32 %v359, %v405
    %v416 = vadd.f32 %v361, %v405
    %v417 = vadd.f32 %v363, %v405
    %v418 = vadd.f32 %v365, %v405
    %v419 = vadd.f32 %v367, %v405
    %v420 = vadd.f32 %v369, %v405
    %v421 = vadd.f32 %v371, %v405
    %v422 = vadd.f32 %v373, %v405
    %v423 = vadd.f32 %v375, %v405
    %v424 = vadd.f32 %v377, %v405
    %v425 = vadd.f32 %v379, %v405
    %v426 = vadd.f32 %v381, %v405
    %v427 = vadd.f32 %v383, %v405
    %v428 = vadd.f32 %v385, %v405
    %v429 = vadd.f32 %v387, %v405
    %v430 = vadd.f32 %v389, %v405
    %v431 = vadd.f32 %v391, %v405
    %v432 = vadd.f32 %v393, %v405
    %v433 = vadd.f32 %v395, %v405
    %v434 = vadd.f32 %v397, %v405
    %v435 = vadd.f32 %v399, %v405
    %v436 = vadd.f32 %v401, %v405
    %v437 = vadd.f32 %v403, %v405
    %v438 = vsub.f32 0.0, %v406
    %v439 = vsub.f32 0.0, %v407
    %v440 = vsub.f32 0.0, %v408
    %v441 = vsub.f32 0.0, %v409
    %v442 = vsub.f32 0.0, %v410
    %v443 = vsub.f32 0.0, %v411
    %v444 = vsub.f32 0.0, %v412
    %v445 = vsub.f32 0.0, %v413
    %v446 = vsub.f32 0.0, %v414
    %v447 = vsub.f32 0.0, %v415
    %v448 = vsub.f32 0.0, %v416
    %v449 = vsub.f32 0.0, %v417
    %v450 = vsub.f32 0.0, %v418
    %v451 = vsub.f32 0.0, %v419
    %v452 = vsub.f32 0.0, %v420
    %v453 = vsub.f32 0.0, %v421
    %v454 = vsub.f32 0.0, %v422
    %v455 = vsub.f32 0.0, %v423
    %v456 = vsub.f32 0.0, %v424
    %v457 = vsub.f32 0.0, %v425
    %v458 = vsub.f32 0.0, %v426
    %v459 = vsub.f32 0.0, %v427
    %v460 = vsub.f32 0.0, %v428
    %v461 = vsub.f32 0.0, %v429
    %v462 = vsub.f32 0.0, %v430
    %v463 = vsub.f32 0.0, %v431
    %v464 = vsub.f32 0.0, %v432
    %v465 = vsub.f32 0.0, %v433
    %v466 = vsub.f32 0.0, %v434
    %v467 = vsub.f32 0.0, %v435
    %v468 = vsub.f32 0.0, %v436
    %v469 = vsub.f32 0.0, %v437
    %v470 = vmul.f32 %v438, 1.442695
    %v471 = vpow.pop %v470
    %v472 = vmul.f32 %v439, 1.442695
    %v473 = vpow.pop %v472
    %v474 = vmul.f32 %v440, 1.442695
    %v475 = vpow.pop %v474
    %v476 = vmul.f32 %v441, 1.442695
    %v477 = vpow.pop %v476
    %v478 = vmul.f32 %v442, 1.442695
    %v479 = vpow.pop %v478
    %v480 = vmul.f32 %v443, 1.442695
    %v481 = vpow.pop %v480
    %v482 = vmul.f32 %v444, 1.442695
    %v483 = vpow.pop %v482
    %v484 = vmul.f32 %v445, 1.442695
    %v485 = vpow.pop %v484
    %v486 = vmul.f32 %v446, 1.442695
    %v487 = vpow.pop %v486
    %v488 = vmul.f32 %v447, 1.442695
    %v489 = vpow.pop %v488
    %v490 = vmul.f32 %v448, 1.442695
    %v491 = vpow.pop %v490
    %v492 = vmul.f32 %v449, 1.442695
    %v493 = vpow.pop %v492
    %v494 = vmul.f32 %v450, 1.442695
    %v495 = vpow.pop %v494
    %v496 = vmul.f32 %v451, 1.442695
    %v497 = vpow.pop %v496
    %v498 = vmul.f32 %v452, 1.442695
    %v499 = vpow.pop %v498
    %v500 = vmul.f32 %v453, 1.442695
    %v501 = vpow.pop %v500
    %v502 = vmul.f32 %v454, 1.442695
    %v503 = vpow.pop %v502
    %v504 = vmul.f32 %v455, 1.442695
    %v505 = vpow.pop %v504
    %v506 = vmul.f32 %v456, 1.442695
    %v507 = vpow.pop %v506
    %v508 = vmul.f32 %v457, 1.442695
    %v509 = vpow.pop %v508
    %v510 = vmul.f32 %v458, 1.442695
    %v511 = vpow.pop %v510
    %v512 = vmul.f32 %v459, 1.442695
    %v513 = vpow.pop %v512
    %v514 = vmul.f32 %v460, 1.442695
    %v515 = vpow.pop %v514
    %v516 = vmul.f32 %v461, 1.442695
    %v517 = vpow.pop %v516
    %v518 = vmul.f32 %v462, 1.442695
    %v519 = vpow.pop %v518
    %v520 = vmul.f32 %v463, 1.442695
    %v521 = vpow.pop %v520
    %v522 = vmul.f32 %v464, 1.442695
    %v523 = vpow.pop %v522
    %v524 = vmul.f32 %v465, 1.442695
    %v525 = vpow.pop %v524
    %v526 = vmul.f32 %v466, 1.442695
    %v527 = vpow.pop %v526
    %v528 = vmul.f32 %v467, 1.442695
    %v529 = vpow.pop %v528
    %v530 = vmul.f32 %v468, 1.442695
    %v531 = vpow.pop %v530
    %v532 = vmul.f32 %v469, 1.442695
    %v533 = vpow.pop %v532
    %v534 = vadd.f32 %v471, 1.0
    %v535 = vadd.f32 %v473, 1.0
    %v536 = vadd.f32 %v475, 1.0
    %v537 = vadd.f32 %v477, 1.0
    %v538 = vadd.f32 %v479, 1.0
    %v539 = vadd.f32 %v481, 1.0
    %v540 = vadd.f32 %v483, 1.0
    %v541 = vadd.f32 %v485, 1.0
    %v542 = vadd.f32 %v487, 1.0
    %v543 = vadd.f32 %v489, 1.0
    %v544 = vadd.f32 %v491, 1.0
    %v545 = vadd.f32 %v493, 1.0
    %v546 = vadd.f32 %v495, 1.0
    %v547 = vadd.f32 %v497, 1.0
    %v548 = vadd.f32 %v499, 1.0
    %v549 = vadd.f32 %v501, 1.0
    %v550 = vadd.f32 %v503, 1.0
    %v551 = vadd.f32 %v505, 1.0
    %v552 = vadd.f32 %v507, 1.0
    %v553 = vadd.f32 %v509, 1.0
    %v554 = vadd.f32 %v511, 1.0
    %v555 = vadd.f32 %v513, 1.0
    %v556 = vadd.f32 %v515, 1.0
    %v557 = vadd.f32 %v517, 1.0
    %v558 = vadd.f32 %v519, 1.0
    %v559 = vadd.f32 %v521, 1.0
    %v560 = vadd.f32 %v523, 1.0
    %v561 = vadd.f32 %v525, 1.0
    %v562 = vadd.f32 %v527, 1.0
    %v563 = vadd.f32 %v529, 1.0
    %v564 = vadd.f32 %v531, 1.0
    %v565 = vadd.f32 %v533, 1.0
    %v566 = vrcp.pop %v534
    %v567 = vrcp.pop %v535
    %v568 = vrcp.pop %v536
    %v569 = vrcp.pop %v537
    %v570 = vrcp.pop %v538
    %v571 = vrcp.pop %v539
    %v572 = vrcp.pop %v540
    %v573 = vrcp.pop %v541
    %v574 = vrcp.pop %v542
    %v575 = vrcp.pop %v543
    %v576 = vrcp.pop %v544
    %v577 = vrcp.pop %v545
    %v578 = vrcp.pop %v546
    %v579 = vrcp.pop %v547
    %v580 = vrcp.pop %v548
    %v581 = vrcp.pop %v549
    %v582 = vrcp.pop %v550
    %v583 = vrcp.pop %v551
    %v584 = vrcp.pop %v552
    %v585 = vrcp.pop %v553
    %v586 = vrcp.pop %v554
    %v587 = vrcp.pop %v555
    %v588 = vrcp.pop %v556
    %v589 = vrcp.pop %v557
    %v590 = vrcp.pop %v558
    %v591 = vrcp.pop %v559
    %v592 = vrcp.pop %v560
    %v593 = vrcp.pop %v561
    %v594 = vrcp.pop %v562
    %v595 = vrcp.pop %v563
    %v596 = vrcp.pop %v564
    %v597 = vrcp.pop %v565
    %v630 = vperm.slane %v566, 0
    %v631 = vperm.slane %v566, 1
    %v632 = vperm.slane %v566, 2
    %v633 = vperm.slane %v566, 3
    %v634 = vperm.slane %v566, 4
    %v635 = vperm.slane %v566, 5
    %v636 = vperm.slane %v566, 6
    %v637 = vperm.slane %v566, 7
    %v638 = vperm.slane %v567, 0
    %v639 = vperm.slane %v567, 1
    %v640 = vperm.slane %v567, 2
    %v641 = vperm.slane %v567, 3
    %v642 = vperm.slane %v567, 4
    %v643 = vperm.slane %v567, 5
    %v644 = vperm.slane %v567, 6
    %v645 = vperm.slane %v567, 7
    %v646 = vperm.slane %v568, 0
    %v647 = vperm.slane %v568, 1
    %v648 = vperm.slane %v568, 2
    %v649 = vperm.slane %v568, 3
    %v650 = vperm.slane %v568, 4
    %v651 = vperm.slane %v568, 5
    %v652 = vperm.slane %v568, 6
    %v653 = vperm.slane %v568, 7
    %v654 = vperm.slane %v569, 0
    %v655 = vperm.slane %v569, 1
    %v656 = vperm.slane %v569, 2
    %v657 = vperm.slane %v569, 3
    %v658 = vperm.slane %v569, 4
    %v659 = vperm.slane %v569, 5
    %v660 = vperm.slane %v569, 6
    %v661 = vperm.slane %v569, 7
    %v662 = vperm.slane %v570, 0
    %v663 = vperm.slane %v570, 1
    %v664 = vperm.slane %v570, 2
    %v665 = vperm.slane %v570, 3
    %v666 = vperm.slane %v570, 4
    %v667 = vperm.slane %v570, 5
    %v668 = vperm.slane %v570, 6
    %v669 = vperm.slane %v570, 7
    %v670 = vperm.slane %v571, 0
    %v671 = vperm.slane %v571, 1
    %v672 = vperm.slane %v571, 2
    %v673 = vperm.slane %v571, 3
    %v674 = vperm.slane %v571, 4
    %v675 = vperm.slane %v571, 5
    %v676 = vperm.slane %v571, 6
    %v677 = vperm.slane %v571, 7
    %v678 = vperm.slane %v572, 0
    %v679 = vperm.slane %v572, 1
    %v680 = vperm.slane %v572, 2
    %v681 = vperm.slane %v572, 3
    %v682 = vperm.slane %v572, 4
    %v683 = vperm.slane %v572, 5
    %v684 = vperm.slane %v572, 6
    %v685 = vperm.slane %v572, 7
    %v686 = vperm.slane %v573, 0
    %v687 = vperm.slane %v573, 1
    %v688 = vperm.slane %v573, 2
    %v689 = vperm.slane %v573, 3
    %v690 = vperm.slane %v573, 4
    %v691 = vperm.slane %v573, 5
    %v692 = vperm.slane %v573, 6
    %v693 = vperm.slane %v573, 7
    %v694 = vperm.slane %v574, 0
    %v695 = vperm.slane %v574, 1
    %v696 = vperm.slane %v574, 2
    %v697 = vperm.slane %v574, 3
    %v698 = vperm.slane %v574, 4
    %v699 = vperm.slane %v574, 5
    %v700 = vperm.slane %v574, 6
    %v701 = vperm.slane %v574, 7
    %v702 = vperm.slane %v575, 0
    %v703 = vperm.slane %v575, 1
    %v704 = vperm.slane %v575, 2
    %v705 = vperm.slane %v575, 3
    %v706 = vperm.slane %v575, 4
    %v707 = vperm.slane %v575, 5
    %v708 = vperm.slane %v575, 6
    %v709 = vperm.slane %v575, 7
    %v710 = vperm.slane %v576, 0
    %v711 = vperm.slane %v576, 1
    %v712 = vperm.slane %v576, 2
    %v713 = vperm.slane %v576, 3
    %v714 = vperm.slane %v576, 4
    %v715 = vperm.slane %v576, 5
    %v716 = vperm.slane %v576, 6
    %v717 = vperm.slane %v576, 7
    %v718 = vperm.slane %v577, 0
    %v719 = vperm.slane %v577, 1
    %v720 = vperm.slane %v577, 2
    %v721 = vperm.slane %v577, 3
    %v722 = vperm.slane %v577, 4
    %v723 = vperm.slane %v577, 5
    %v724 = vperm.slane %v577, 6
    %v725 = vperm.slane %v577, 7
    %v726 = vperm.slane %v578, 0
    %v727 = vperm.slane %v578, 1
    %v728 = vperm.slane %v578, 2
    %v729 = vperm.slane %v578, 3
    %v730 = vperm.slane %v578, 4
    %v731 = vperm.slane %v578, 5
    %v732 = vperm.slane %v578, 6
    %v733 = vperm.slane %v578, 7
    %v734 = vperm.slane %v579, 0
    %v735 = vperm.slane %v579, 1
    %v736 = vperm.slane %v579, 2
    %v737 = vperm.slane %v579, 3
    %v738 = vperm.slane %v579, 4
    %v739 = vperm.slane %v579, 5
    %v740 = vperm.slane %v579, 6
    %v741 = vperm.slane %v579, 7
    %v742 = vperm.slane %v580, 0
    %v743 = vperm.slane %v580, 1
    %v744 = vperm.slane %v580, 2
    %v745 = vperm.slane %v580, 3
    %v746 = vperm.slane %v580, 4
    %v747 = vperm.slane %v580, 5
    %v748 = vperm.slane %v580, 6
    %v749 = vperm.slane %v580, 7
    %v750 = vperm.slane %v581, 0
    %v751 = vperm.slane %v581, 1
    %v752 = vperm.slane %v581, 2
    %v753 = vperm.slane %v581, 3
    %v754 = vperm.slane %v581, 4
    %v755 = vperm.slane %v581, 5
    %v756 = vperm.slane %v581, 6
    %v757 = vperm.slane %v581, 7
    %v758 = vperm.slane %v582, 0
    %v759 = vperm.slane %v582, 1
    %v760 = vperm.slane %v582, 2
    %v761 = vperm.slane %v582, 3
    %v762 = vperm.slane %v582, 4
    %v763 = vperm.slane %v582, 5
    %v764 = vperm.slane %v582, 6
    %v765 = vperm.slane %v582, 7
    %v766 = vperm.slane %v583, 0
    %v767 = vperm.slane %v583, 1
    %v768 = vperm.slane %v583, 2
    %v769 = vperm.slane %v583, 3
    %v770 = vperm.slane %v583, 4
    %v771 = vperm.slane %v583, 5
    %v772 = vperm.slane %v583, 6
    %v773 = vperm.slane %v583, 7
    %v774 = vperm.slane %v584, 0
    %v775 = vperm.slane %v584, 1
    %v776 = vperm.slane %v584, 2
    %v777 = vperm.slane %v584, 3
    %v778 = vperm.slane %v584, 4
    %v779 = vperm.slane %v584, 5
    %v780 = vperm.slane %v584, 6
    %v781 = vperm.slane %v584, 7
    %v782 = vperm.slane %v585, 0
    %v783 = vperm.slane %v585, 1
    %v784 = vperm.slane %v585, 2
    %v785 = vperm.slane %v585, 3
    %v786 = vperm.slane %v585, 4
    %v787 = vperm.slane %v585, 5
    %v788 = vperm.slane %v585, 6
    %v789 = vperm.slane %v585, 7
    %v790 = vperm.slane %v586, 0
    %v791 = vperm.slane %v586, 1
    %v792 = vperm.slane %v586, 2
    %v793 = vperm.slane %v586, 3
    %v794 = vperm.slane %v586, 4
    %v795 = vperm.slane %v586, 5
    %v796 = vperm.slane %v586, 6
    %v797 = vperm.slane %v586, 7
    %v798 = vperm.slane %v587, 0
    %v799 = vperm.slane %v587, 1
    %v800 = vperm.slane %v587, 2
    %v801 = vperm.slane %v587, 3
    %v802 = vperm.slane %v587, 4
    %v803 = vperm.slane %v587, 5
    %v804 = vperm.slane %v587, 6
    %v805 = vperm.slane %v587, 7
    %v806 = vperm.slane %v588, 0
    %v807 = vperm.slane %v588, 1
    %v808 = vperm.slane %v588, 2
    %v809 = vperm.slane %v588, 3
    %v810 = vperm.slane %v588, 4
    %v811 = vperm.slane %v588, 5
    %v812 = vperm.slane %v588, 6
    %v813 = vperm.slane %v588, 7
    %v814 = vperm.slane %v589, 0
    %v815 = vperm.slane %v589, 1
    %v816 = vperm.slane %v589, 2
    %v817 = vperm.slane %v589, 3
    %v818 = vperm.slane %v589, 4
    %v819 = vperm.slane %v589, 5
    %v820 = vperm.slane %v589, 6
    %v821 = vperm.slane %v589, 7
    %v822 = vperm.slane %v590, 0
    %v823 = vperm.slane %v590, 1
    %v824 = vperm.slane %v590, 2
    %v825 = vperm.slane %v590, 3
    %v826 = vperm.slane %v590, 4
    %v827 = vperm.slane %v590, 5
    %v828 = vperm.slane %v590, 6
    %v829 = vperm.slane %v590, 7
    %v830 = vperm.slane %v591, 0
    %v831 = vperm.slane %v591, 1
    %v832 = vperm.slane %v591, 2
    %v833 = vperm.slane %v591, 3
    %v834 = vperm.slane %v591, 4
    %v835 = vperm.slane %v591, 5
    %v836 = vperm.slane %v591, 6
    %v837 = vperm.slane %v591, 7
    %v838 = vperm.slane %v592, 0
    %v839 = vperm.slane %v592, 1
    %v840 = vperm.slane %v592, 2
    %v841 = vperm.slane %v592, 3
    %v842 = vperm.slane %v592, 4
    %v843 = vperm.slane %v592, 5
    %v844 = vperm.slane %v592, 6
    %v845 = vperm.slane %v592, 7
    %v846 = vperm.slane %v593, 0
    %v847 = vperm.slane %v593, 1
    %v848 = vperm.slane %v593, 2
    %v849 = vperm.slane %v593, 3
    %v850 = vperm.slane %v593, 4
    %v851 = vperm.slane %v593, 5
    %v852 = vperm.slane %v593, 6
    %v853 = vperm.slane %v593, 7
    %v854 = vperm.slane %v594, 0
    %v855 = vperm.slane %v594, 1
    %v856 = vperm.slane %v594, 2
    %v857 = vperm.slane %v594, 3
    %v858 = vperm.slane %v594, 4
    %v859 = vperm.slane %v594, 5
    %v860 = vperm.slane %v594, 6
    %v861 = vperm.slane %v594, 7
    %v862 = vperm.slane %v595, 0
    %v863 = vperm.slane %v595, 1
    %v864 = vperm.slane %v595, 2
    %v865 = vperm.slane %v595, 3
    %v866 = vperm.slane %v595, 4
    %v867 = vperm.slane %v595, 5
    %v868 = vperm.slane %v595, 6
    %v869 = vperm.slane %v595, 7
    %v870 = vperm.slane %v596, 0
    %v871 = vperm.slane %v596, 1
    %v872 = vperm.slane %v596, 2
    %v873 = vperm.slane %v596, 3
    %v874 = vperm.slane %v596, 4
    %v875 = vperm.slane %v596, 5
    %v876 = vperm.slane %v596, 6
    %v877 = vperm.slane %v596, 7
    %v878 = vperm.slane %v597, 0
    %v879 = vperm.slane %v597, 1
    %v880 = vperm.slane %v597, 2
    %v881 = vperm.slane %v597, 3
    %v882 = vperm.slane %v597, 4
    %v883 = vperm.slane %v597, 5
    %v884 = vperm.slane %v597, 6
    %v885 = vperm.slane %v597, 7
    %886 = vst [vmem:[#allocation1] ss:$9 sm:$0xff] %v630
    %s887 = scalar_lea.vmem [#allocation1], 1
    %888 = vst [vmem:[%s887] ss:$9 sm:$0xff] %v631
    %s889 = scalar_lea.vmem [#allocation1], 2
    %890 = vst [vmem:[%s889] ss:$9 sm:$0xff] %v632
    %s891 = scalar_lea.vmem [#allocation1], 3
    %892 = vst [vmem:[%s891] ss:$9 sm:$0xff] %v633
    %s893 = scalar_lea.vmem [#allocation1], 4
    %894 = vst [vmem:[%s893] ss:$9 sm:$0xff] %v634
    %s895 = scalar_lea.vmem [#allocation1], 5
    %896 = vst [vmem:[%s895] ss:$9 sm:$0xff] %v635
    %s897 = scalar_lea.vmem [#allocation1], 6
    %898 = vst [vmem:[%s897] ss:$9 sm:$0xff] %v636
    %s899 = scalar_lea.vmem [#allocation1], 7
    %900 = vst [vmem:[%s899] ss:$9 sm:$0xff] %v637
    %v901 = vld [vmem:[#allocation1] sm:$0xff]
    %902 = vst [vmem:[#allocation1] ss:$9 sm:$0xff] %v638
    %903 = vst [vmem:[%s887] ss:$9 sm:$0xff] %v639
    %904 = vst [vmem:[%s889] ss:$9 sm:$0xff] %v640
    %905 = vst [vmem:[%s891] ss:$9 sm:$0xff] %v641
    %906 = vst [vmem:[%s893] ss:$9 sm:$0xff] %v642
    %907 = vst [vmem:[%s895] ss:$9 sm:$0xff] %v643
    %908 = vst [vmem:[%s897] ss:$9 sm:$0xff] %v644
    %909 = vst [vmem:[%s899] ss:$9 sm:$0xff] %v645
    %v910 = vld [vmem:[#allocation1] sm:$0xff]
    %911 = vst [vmem:[#allocation1] ss:$9 sm:$0xff] %v646
    %912 = vst [vmem:[%s887] ss:$9 sm:$0xff] %v647
    %913 = vst [vmem:[%s889] ss:$9 sm:$0xff] %v648
    %914 = vst [vmem:[%s891] ss:$9 sm:$0xff] %v649
    %915 = vst [vmem:[%s893] ss:$9 sm:$0xff] %v650
    %916 = vst [vmem:[%s895] ss:$9 sm:$0xff] %v651
    %917 = vst [vmem:[%s897] ss:$9 sm:$0xff] %v652
    %918 = vst [vmem:[%s899] ss:$9 sm:$0xff] %v653
    %v919 = vld [vmem:[#allocation1] sm:$0xff]
    %920 = vst [vmem:[#allocation1] ss:$9 sm:$0xff] %v654
    %921 = vst [vmem:[%s887] ss:$9 sm:$0xff] %v655
    %922 = vst [vmem:[%s889] ss:$9 sm:$0xff] %v656
    %923 = vst [vmem:[%s891] ss:$9 sm:$0xff] %v657
    %924 = vst [vmem:[%s893] ss:$9 sm:$0xff] %v658
    %925 = vst [vmem:[%s895] ss:$9 sm:$0xff] %v659
    %926 = vst [vmem:[%s897] ss:$9 sm:$0xff] %v660
    %927 = vst [vmem:[%s899] ss:$9 sm:$0xff] %v661
    %v928 = vld [vmem:[#allocation1] sm:$0xff]
    %929 = vst [vmem:[#allocation1] ss:$9 sm:$0xff] %v662
    %930 = vst [vmem:[%s887] ss:$9 sm:$0xff] %v663
    %931 = vst [vmem:[%s889] ss:$9 sm:$0xff] %v664
    %932 = vst [vmem:[%s891] ss:$9 sm:$0xff] %v665
    %933 = vst [vmem:[%s893] ss:$9 sm:$0xff] %v666
    %934 = vst [vmem:[%s895] ss:$9 sm:$0xff] %v667
    %935 = vst [vmem:[%s897] ss:$9 sm:$0xff] %v668
    %936 = vst [vmem:[%s899] ss:$9 sm:$0xff] %v669
    %v937 = vld [vmem:[#allocation1] sm:$0xff]
    %938 = vst [vmem:[#allocation1] ss:$9 sm:$0xff] %v670
    %939 = vst [vmem:[%s887] ss:$9 sm:$0xff] %v671
    %940 = vst [vmem:[%s889] ss:$9 sm:$0xff] %v672
    %941 = vst [vmem:[%s891] ss:$9 sm:$0xff] %v673
    %942 = vst [vmem:[%s893] ss:$9 sm:$0xff] %v674
    %943 = vst [vmem:[%s895] ss:$9 sm:$0xff] %v675
    %944 = vst [vmem:[%s897] ss:$9 sm:$0xff] %v676
    %945 = vst [vmem:[%s899] ss:$9 sm:$0xff] %v677
    %v946 = vld [vmem:[#allocation1] sm:$0xff]
    %947 = vst [vmem:[#allocation1] ss:$9 sm:$0xff] %v678
    %948 = vst [vmem:[%s887] ss:$9 sm:$0xff] %v679
    %949 = vst [vmem:[%s889] ss:$9 sm:$0xff] %v680
    %950 = vst [vmem:[%s891] ss:$9 sm:$0xff] %v681
    %951 = vst [vmem:[%s893] ss:$9 sm:$0xff] %v682
    %952 = vst [vmem:[%s895] ss:$9 sm:$0xff] %v683
    %953 = vst [vmem:[%s897] ss:$9 sm:$0xff] %v684
    %954 = vst [vmem:[%s899] ss:$9 sm:$0xff] %v685
    %v955 = vld [vmem:[#allocation1] sm:$0xff]
    %956 = vst [vmem:[#allocation1] ss:$9 sm:$0xff] %v686
    %957 = vst [vmem:[%s887] ss:$9 sm:$0xff] %v687
    %958 = vst [vmem:[%s889] ss:$9 sm:$0xff] %v688
    %959 = vst [vmem:[%s891] ss:$9 sm:$0xff] %v689
    %960 = vst [vmem:[%s893] ss:$9 sm:$0xff] %v690
    %961 = vst [vmem:[%s895] ss:$9 sm:$0xff] %v691
    %962 = vst [vmem:[%s897] ss:$9 sm:$0xff] %v692
    %963 = vst [vmem:[%s899] ss:$9 sm:$0xff] %v693
    %v964 = vld [vmem:[#allocation1] sm:$0xff]
    %965 = vst [vmem:[#allocation1] ss:$9 sm:$0xff] %v694
    %966 = vst [vmem:[%s887] ss:$9 sm:$0xff] %v695
    %967 = vst [vmem:[%s889] ss:$9 sm:$0xff] %v696
    %968 = vst [vmem:[%s891] ss:$9 sm:$0xff] %v697
    %969 = vst [vmem:[%s893] ss:$9 sm:$0xff] %v698
    %970 = vst [vmem:[%s895] ss:$9 sm:$0xff] %v699
    %971 = vst [vmem:[%s897] ss:$9 sm:$0xff] %v700
    %972 = vst [vmem:[%s899] ss:$9 sm:$0xff] %v701
    %v973 = vld [vmem:[#allocation1] sm:$0xff]
    %974 = vst [vmem:[#allocation1] ss:$9 sm:$0xff] %v702
    %975 = vst [vmem:[%s887] ss:$9 sm:$0xff] %v703
    %976 = vst [vmem:[%s889] ss:$9 sm:$0xff] %v704
    %977 = vst [vmem:[%s891] ss:$9 sm:$0xff] %v705
    %978 = vst [vmem:[%s893] ss:$9 sm:$0xff] %v706
    %979 = vst [vmem:[%s895] ss:$9 sm:$0xff] %v707
    %980 = vst [vmem:[%s897] ss:$9 sm:$0xff] %v708
    %981 = vst [vmem:[%s899] ss:$9 sm:$0xff] %v709
    %v982 = vld [vmem:[#allocation1] sm:$0xff]
    %983 = vst [vmem:[#allocation1] ss:$9 sm:$0xff] %v710
    %984 = vst [vmem:[%s887] ss:$9 sm:$0xff] %v711
    %985 = vst [vmem:[%s889] ss:$9 sm:$0xff] %v712
    %986 = vst [vmem:[%s891] ss:$9 sm:$0xff] %v713
    %987 = vst [vmem:[%s893] ss:$9 sm:$0xff] %v714
    %988 = vst [vmem:[%s895] ss:$9 sm:$0xff] %v715
    %989 = vst [vmem:[%s897] ss:$9 sm:$0xff] %v716
    %990 = vst [vmem:[%s899] ss:$9 sm:$0xff] %v717
    %v991 = vld [vmem:[#allocation1] sm:$0xff]
    %992 = vst [vmem:[#allocation1] ss:$9 sm:$0xff] %v718
    %993 = vst [vmem:[%s887] ss:$9 sm:$0xff] %v719
    %994 = vst [vmem:[%s889] ss:$9 sm:$0xff] %v720
    %995 = vst [vmem:[%s891] ss:$9 sm:$0xff] %v721
    %996 = vst [vmem:[%s893] ss:$9 sm:$0xff] %v722
    %997 = vst [vmem:[%s895] ss:$9 sm:$0xff] %v723
    %998 = vst [vmem:[%s897] ss:$9 sm:$0xff] %v724
    %999 = vst [vmem:[%s899] ss:$9 sm:$0xff] %v725
    %v1000 = vld [vmem:[#allocation1] sm:$0xff]
    %1001 = vst [vmem:[#allocation1] ss:$9 sm:$0xff] %v726
    %1002 = vst [vmem:[%s887] ss:$9 sm:$0xff] %v727
    %1003 = vst [vmem:[%s889] ss:$9 sm:$0xff] %v728
    %1004 = vst [vmem:[%s891] ss:$9 sm:$0xff] %v729
    %1005 = vst [vmem:[%s893] ss:$9 sm:$0xff] %v730
    %1006 = vst [vmem:[%s895] ss:$9 sm:$0xff] %v731
    %1007 = vst [vmem:[%s897] ss:$9 sm:$0xff] %v732
    %1008 = vst [vmem:[%s899] ss:$9 sm:$0xff] %v733
    %v1009 = vld [vmem:[#allocation1] sm:$0xff]
    %1010 = vst [vmem:[#allocation1] ss:$9 sm:$0xff] %v734
    %1011 = vst [vmem:[%s887] ss:$9 sm:$0xff] %v735
    %1012 = vst [vmem:[%s889] ss:$9 sm:$0xff] %v736
    %1013 = vst [vmem:[%s891] ss:$9 sm:$0xff] %v737
    %1014 = vst [vmem:[%s893] ss:$9 sm:$0xff] %v738
    %1015 = vst [vmem:[%s895] ss:$9 sm:$0xff] %v739
    %1016 = vst [vmem:[%s897] ss:$9 sm:$0xff] %v740
    %1017 = vst [vmem:[%s899] ss:$9 sm:$0xff] %v741
    %v1018 = vld [vmem:[#allocation1] sm:$0xff]
    %1019 = vst [vmem:[#allocation1] ss:$9 sm:$0xff] %v742
    %1020 = vst [vmem:[%s887] ss:$9 sm:$0xff] %v743
    %1021 = vst [vmem:[%s889] ss:$9 sm:$0xff] %v744
    %1022 = vst [vmem:[%s891] ss:$9 sm:$0xff] %v745
    %1023 = vst [vmem:[%s893] ss:$9 sm:$0xff] %v746
    %1024 = vst [vmem:[%s895] ss:$9 sm:$0xff] %v747
    %1025 = vst [vmem:[%s897] ss:$9 sm:$0xff] %v748
    %1026 = vst [vmem:[%s899] ss:$9 sm:$0xff] %v749
    %v1027 = vld [vmem:[#allocation1] sm:$0xff]
    %1028 = vst [vmem:[#allocation1] ss:$9 sm:$0xff] %v750
    %1029 = vst [vmem:[%s887] ss:$9 sm:$0xff] %v751
    %1030 = vst [vmem:[%s889] ss:$9 sm:$0xff] %v752
    %1031 = vst [vmem:[%s891] ss:$9 sm:$0xff] %v753
    %1032 = vst [vmem:[%s893] ss:$9 sm:$0xff] %v754
    %1033 = vst [vmem:[%s895] ss:$9 sm:$0xff] %v755
    %1034 = vst [vmem:[%s897] ss:$9 sm:$0xff] %v756
    %1035 = vst [vmem:[%s899] ss:$9 sm:$0xff] %v757
    %v1036 = vld [vmem:[#allocation1] sm:$0xff]
    %1037 = vst [vmem:[#allocation1] ss:$9 sm:$0xff] %v758
    %1038 = vst [vmem:[%s887] ss:$9 sm:$0xff] %v759
    %1039 = vst [vmem:[%s889] ss:$9 sm:$0xff] %v760
    %1040 = vst [vmem:[%s891] ss:$9 sm:$0xff] %v761
    %1041 = vst [vmem:[%s893] ss:$9 sm:$0xff] %v762
    %1042 = vst [vmem:[%s895] ss:$9 sm:$0xff] %v763
    %1043 = vst [vmem:[%s897] ss:$9 sm:$0xff] %v764
    %1044 = vst [vmem:[%s899] ss:$9 sm:$0xff] %v765
    %v1045 = vld [vmem:[#allocation1] sm:$0xff]
    %1046 = vst [vmem:[#allocation1] ss:$9 sm:$0xff] %v766
    %1047 = vst [vmem:[%s887] ss:$9 sm:$0xff] %v767
    %1048 = vst [vmem:[%s889] ss:$9 sm:$0xff] %v768
    %1049 = vst [vmem:[%s891] ss:$9 sm:$0xff] %v769
    %1050 = vst [vmem:[%s893] ss:$9 sm:$0xff] %v770
    %1051 = vst [vmem:[%s895] ss:$9 sm:$0xff] %v771
    %1052 = vst [vmem:[%s897] ss:$9 sm:$0xff] %v772
    %1053 = vst [vmem:[%s899] ss:$9 sm:$0xff] %v773
    %v1054 = vld [vmem:[#allocation1] sm:$0xff]
    %1055 = vst [vmem:[#allocation1] ss:$9 sm:$0xff] %v774
    %1056 = vst [vmem:[%s887] ss:$9 sm:$0xff] %v775
    %1057 = vst [vmem:[%s889] ss:$9 sm:$0xff] %v776
    %1058 = vst [vmem:[%s891] ss:$9 sm:$0xff] %v777
    %1059 = vst [vmem:[%s893] ss:$9 sm:$0xff] %v778
    %1060 = vst [vmem:[%s895] ss:$9 sm:$0xff] %v779
    %1061 = vst [vmem:[%s897] ss:$9 sm:$0xff] %v780
    %1062 = vst [vmem:[%s899] ss:$9 sm:$0xff] %v781
    %v1063 = vld [vmem:[#allocation1] sm:$0xff]
    %1064 = vst [vmem:[#allocation1] ss:$9 sm:$0xff] %v782
    %1065 = vst [vmem:[%s887] ss:$9 sm:$0xff] %v783
    %1066 = vst [vmem:[%s889] ss:$9 sm:$0xff] %v784
    %1067 = vst [vmem:[%s891] ss:$9 sm:$0xff] %v785
    %1068 = vst [vmem:[%s893] ss:$9 sm:$0xff] %v786
    %1069 = vst [vmem:[%s895] ss:$9 sm:$0xff] %v787
    %1070 = vst [vmem:[%s897] ss:$9 sm:$0xff] %v788
    %1071 = vst [vmem:[%s899] ss:$9 sm:$0xff] %v789
    %v1072 = vld [vmem:[#allocation1] sm:$0xff]
    %1073 = vst [vmem:[#allocation1] ss:$9 sm:$0xff] %v790
    %1074 = vst [vmem:[%s887] ss:$9 sm:$0xff] %v791
    %1075 = vst [vmem:[%s889] ss:$9 sm:$0xff] %v792
    %1076 = vst [vmem:[%s891] ss:$9 sm:$0xff] %v793
    %1077 = vst [vmem:[%s893] ss:$9 sm:$0xff] %v794
    %1078 = vst [vmem:[%s895] ss:$9 sm:$0xff] %v795
    %1079 = vst [vmem:[%s897] ss:$9 sm:$0xff] %v796
    %1080 = vst [vmem:[%s899] ss:$9 sm:$0xff] %v797
    %v1081 = vld [vmem:[#allocation1] sm:$0xff]
    %1082 = vst [vmem:[#allocation1] ss:$9 sm:$0xff] %v798
    %1083 = vst [vmem:[%s887] ss:$9 sm:$0xff] %v799
    %1084 = vst [vmem:[%s889] ss:$9 sm:$0xff] %v800
    %1085 = vst [vmem:[%s891] ss:$9 sm:$0xff] %v801
    %1086 = vst [vmem:[%s893] ss:$9 sm:$0xff] %v802
    %1087 = vst [vmem:[%s895] ss:$9 sm:$0xff] %v803
    %1088 = vst [vmem:[%s897] ss:$9 sm:$0xff] %v804
    %1089 = vst [vmem:[%s899] ss:$9 sm:$0xff] %v805
    %v1090 = vld [vmem:[#allocation1] sm:$0xff]
    %1091 = vst [vmem:[#allocation1] ss:$9 sm:$0xff] %v806
    %1092 = vst [vmem:[%s887] ss:$9 sm:$0xff] %v807
    %1093 = vst [vmem:[%s889] ss:$9 sm:$0xff] %v808
    %1094 = vst [vmem:[%s891] ss:$9 sm:$0xff] %v809
    %1095 = vst [vmem:[%s893] ss:$9 sm:$0xff] %v810
    %1096 = vst [vmem:[%s895] ss:$9 sm:$0xff] %v811
    %1097 = vst [vmem:[%s897] ss:$9 sm:$0xff] %v812
    %1098 = vst [vmem:[%s899] ss:$9 sm:$0xff] %v813
    %v1099 = vld [vmem:[#allocation1] sm:$0xff]
    %1100 = vst [vmem:[#allocation1] ss:$9 sm:$0xff] %v814
    %1101 = vst [vmem:[%s887] ss:$9 sm:$0xff] %v815
    %1102 = vst [vmem:[%s889] ss:$9 sm:$0xff] %v816
    %1103 = vst [vmem:[%s891] ss:$9 sm:$0xff] %v817
    %1104 = vst [vmem:[%s893] ss:$9 sm:$0xff] %v818
    %1105 = vst [vmem:[%s895] ss:$9 sm:$0xff] %v819
    %1106 = vst [vmem:[%s897] ss:$9 sm:$0xff] %v820
    %1107 = vst [vmem:[%s899] ss:$9 sm:$0xff] %v821
    %v1108 = vld [vmem:[#allocation1] sm:$0xff]
    %1109 = vst [vmem:[#allocation1] ss:$9 sm:$0xff] %v822
    %1110 = vst [vmem:[%s887] ss:$9 sm:$0xff] %v823
    %1111 = vst [vmem:[%s889] ss:$9 sm:$0xff] %v824
    %1112 = vst [vmem:[%s891] ss:$9 sm:$0xff] %v825
    %1113 = vst [vmem:[%s893] ss:$9 sm:$0xff] %v826
    %1114 = vst [vmem:[%s895] ss:$9 sm:$0xff] %v827
    %1115 = vst [vmem:[%s897] ss:$9 sm:$0xff] %v828
    %1116 = vst [vmem:[%s899] ss:$9 sm:$0xff] %v829
    %v1117 = vld [vmem:[#allocation1] sm:$0xff]
    %1118 = vst [vmem:[#allocation1] ss:$9 sm:$0xff] %v830
    %1119 = vst [vmem:[%s887] ss:$9 sm:$0xff] %v831
    %1120 = vst [vmem:[%s889] ss:$9 sm:$0xff] %v832
    %1121 = vst [vmem:[%s891] ss:$9 sm:$0xff] %v833
    %1122 = vst [vmem:[%s893] ss:$9 sm:$0xff] %v834
    %1123 = vst [vmem:[%s895] ss:$9 sm:$0xff] %v835
    %1124 = vst [vmem:[%s897] ss:$9 sm:$0xff] %v836
    %1125 = vst [vmem:[%s899] ss:$9 sm:$0xff] %v837
    %v1126 = vld [vmem:[#allocation1] sm:$0xff]
    %1127 = vst [vmem:[#allocation1] ss:$9 sm:$0xff] %v838
    %1128 = vst [vmem:[%s887] ss:$9 sm:$0xff] %v839
    %1129 = vst [vmem:[%s889] ss:$9 sm:$0xff] %v840
    %1130 = vst [vmem:[%s891] ss:$9 sm:$0xff] %v841
    %1131 = vst [vmem:[%s893] ss:$9 sm:$0xff] %v842
    %1132 = vst [vmem:[%s895] ss:$9 sm:$0xff] %v843
    %1133 = vst [vmem:[%s897] ss:$9 sm:$0xff] %v844
    %1134 = vst [vmem:[%s899] ss:$9 sm:$0xff] %v845
    %v1135 = vld [vmem:[#allocation1] sm:$0xff]
    %1136 = vst [vmem:[#allocation1] ss:$9 sm:$0xff] %v846
    %1137 = vst [vmem:[%s887] ss:$9 sm:$0xff] %v847
    %1138 = vst [vmem:[%s889] ss:$9 sm:$0xff] %v848
    %1139 = vst [vmem:[%s891] ss:$9 sm:$0xff] %v849
    %1140 = vst [vmem:[%s893] ss:$9 sm:$0xff] %v850
    %1141 = vst [vmem:[%s895] ss:$9 sm:$0xff] %v851
    %1142 = vst [vmem:[%s897] ss:$9 sm:$0xff] %v852
    %1143 = vst [vmem:[%s899] ss:$9 sm:$0xff] %v853
    %v1144 = vld [vmem:[#allocation1] sm:$0xff]
    %1145 = vst [vmem:[#allocation1] ss:$9 sm:$0xff] %v854
    %1146 = vst [vmem:[%s887] ss:$9 sm:$0xff] %v855
    %1147 = vst [vmem:[%s889] ss:$9 sm:$0xff] %v856
    %1148 = vst [vmem:[%s891] ss:$9 sm:$0xff] %v857
    %1149 = vst [vmem:[%s893] ss:$9 sm:$0xff] %v858
    %1150 = vst [vmem:[%s895] ss:$9 sm:$0xff] %v859
    %1151 = vst [vmem:[%s897] ss:$9 sm:$0xff] %v860
    %1152 = vst [vmem:[%s899] ss:$9 sm:$0xff] %v861
    %v1153 = vld [vmem:[#allocation1] sm:$0xff]
    %1154 = vst [vmem:[#allocation1] ss:$9 sm:$0xff] %v862
    %1155 = vst [vmem:[%s887] ss:$9 sm:$0xff] %v863
    %1156 = vst [vmem:[%s889] ss:$9 sm:$0xff] %v864
    %1157 = vst [vmem:[%s891] ss:$9 sm:$0xff] %v865
    %1158 = vst [vmem:[%s893] ss:$9 sm:$0xff] %v866
    %1159 = vst [vmem:[%s895] ss:$9 sm:$0xff] %v867
    %1160 = vst [vmem:[%s897] ss:$9 sm:$0xff] %v868
    %1161 = vst [vmem:[%s899] ss:$9 sm:$0xff] %v869
    %v1162 = vld [vmem:[#allocation1] sm:$0xff]
    %1163 = vst [vmem:[#allocation1] ss:$9 sm:$0xff] %v870
    %1164 = vst [vmem:[%s887] ss:$9 sm:$0xff] %v871
    %1165 = vst [vmem:[%s889] ss:$9 sm:$0xff] %v872
    %1166 = vst [vmem:[%s891] ss:$9 sm:$0xff] %v873
    %1167 = vst [vmem:[%s893] ss:$9 sm:$0xff] %v874
    %1168 = vst [vmem:[%s895] ss:$9 sm:$0xff] %v875
    %1169 = vst [vmem:[%s897] ss:$9 sm:$0xff] %v876
    %1170 = vst [vmem:[%s899] ss:$9 sm:$0xff] %v877
    %v1171 = vld [vmem:[#allocation1] sm:$0xff]
    %1172 = vst [vmem:[#allocation1] ss:$9 sm:$0xff] %v878
    %1173 = vst [vmem:[%s887] ss:$9 sm:$0xff] %v879
    %1174 = vst [vmem:[%s889] ss:$9 sm:$0xff] %v880
    %1175 = vst [vmem:[%s891] ss:$9 sm:$0xff] %v881
    %1176 = vst [vmem:[%s893] ss:$9 sm:$0xff] %v882
    %1177 = vst [vmem:[%s895] ss:$9 sm:$0xff] %v883
    %1178 = vst [vmem:[%s897] ss:$9 sm:$0xff] %v884
    %1179 = vst [vmem:[%s899] ss:$9 sm:$0xff] %v885
    %v1180 = vld [vmem:[#allocation1] sm:$0xff]
    %1181 = vset.pattern.permute.xlu0 0
    %1182 = vperm.xlu0 %1181, %v901
    %v1183 = vpop.permute.xlu0 %1182
    %1184 = vset.pattern.permute.xlu0 0
    %1185 = vperm.xlu0 %1184, %v910
    %v1186 = vpop.permute.xlu0 %1185
    %1187 = vset.pattern.permute.xlu0 0
    %1188 = vperm.xlu0 %1187, %v919
    %v1189 = vpop.permute.xlu0 %1188
    %1190 = vset.pattern.permute.xlu0 0
    %1191 = vperm.xlu0 %1190, %v928
    %v1192 = vpop.permute.xlu0 %1191
    %1193 = vset.pattern.permute.xlu0 0
    %1194 = vperm.xlu0 %1193, %v937
    %v1195 = vpop.permute.xlu0 %1194
    %1196 = vset.pattern.permute.xlu0 0
    %1197 = vperm.xlu0 %1196, %v946
    %v1198 = vpop.permute.xlu0 %1197
    %1199 = vset.pattern.permute.xlu0 0
    %1200 = vperm.xlu0 %1199, %v955
    %v1201 = vpop.permute.xlu0 %1200
    %1202 = vset.pattern.permute.xlu0 0
    %1203 = vperm.xlu0 %1202, %v964
    %v1204 = vpop.permute.xlu0 %1203
    %1205 = vset.pattern.permute.xlu0 0
    %1206 = vperm.xlu0 %1205, %v973
    %v1207 = vpop.permute.xlu0 %1206
    %1208 = vset.pattern.permute.xlu0 0
    %1209 = vperm.xlu0 %1208, %v982
    %v1210 = vpop.permute.xlu0 %1209
    %1211 = vset.pattern.permute.xlu0 0
    %1212 = vperm.xlu0 %1211, %v991
    %v1213 = vpop.permute.xlu0 %1212
    %1214 = vset.pattern.permute.xlu0 0
    %1215 = vperm.xlu0 %1214, %v1000
    %v1216 = vpop.permute.xlu0 %1215
    %1217 = vset.pattern.permute.xlu0 0
    %1218 = vperm.xlu0 %1217, %v1009
    %v1219 = vpop.permute.xlu0 %1218
    %1220 = vset.pattern.permute.xlu0 0
    %1221 = vperm.xlu0 %1220, %v1018
    %v1222 = vpop.permute.xlu0 %1221
    %1223 = vset.pattern.permute.xlu0 0
    %1224 = vperm.xlu0 %1223, %v1027
    %v1225 = vpop.permute.xlu0 %1224
    %1226 = vset.pattern.permute.xlu0 0
    %1227 = vperm.xlu0 %1226, %v1036
    %v1228 = vpop.permute.xlu0 %1227
    %1229 = vset.pattern.permute.xlu0 0
    %1230 = vperm.xlu0 %1229, %v1045
    %v1231 = vpop.permute.xlu0 %1230
    %1232 = vset.pattern.permute.xlu0 0
    %1233 = vperm.xlu0 %1232, %v1054
    %v1234 = vpop.permute.xlu0 %1233
    %1235 = vset.pattern.permute.xlu0 0
    %1236 = vperm.xlu0 %1235, %v1063
    %v1237 = vpop.permute.xlu0 %1236
    %1238 = vset.pattern.permute.xlu0 0
    %1239 = vperm.xlu0 %1238, %v1072
    %v1240 = vpop.permute.xlu0 %1239
    %1241 = vset.pattern.permute.xlu0 0
    %1242 = vperm.xlu0 %1241, %v1081
    %v1243 = vpop.permute.xlu0 %1242
    %1244 = vset.pattern.permute.xlu0 0
    %1245 = vperm.xlu0 %1244, %v1090
    %v1246 = vpop.permute.xlu0 %1245
    %1247 = vset.pattern.permute.xlu0 0
    %1248 = vperm.xlu0 %1247, %v1099
    %v1249 = vpop.permute.xlu0 %1248
    %1250 = vset.pattern.permute.xlu0 0
    %1251 = vperm.xlu0 %1250, %v1108
    %v1252 = vpop.permute.xlu0 %1251
    %1253 = vset.pattern.permute.xlu0 0
    %1254 = vperm.xlu0 %1253, %v1117
    %v1255 = vpop.permute.xlu0 %1254
    %1256 = vset.pattern.permute.xlu0 0
    %1257 = vperm.xlu0 %1256, %v1126
    %v1258 = vpop.permute.xlu0 %1257
    %1259 = vset.pattern.permute.xlu0 0
    %1260 = vperm.xlu0 %1259, %v1135
    %v1261 = vpop.permute.xlu0 %1260
    %1262 = vset.pattern.permute.xlu0 0
    %1263 = vperm.xlu0 %1262, %v1144
    %v1264 = vpop.permute.xlu0 %1263
    %1265 = vset.pattern.permute.xlu0 0
    %1266 = vperm.xlu0 %1265, %v1153
    %v1267 = vpop.permute.xlu0 %1266
    %1268 = vset.pattern.permute.xlu0 0
    %1269 = vperm.xlu0 %1268, %v1162
    %v1270 = vpop.permute.xlu0 %1269
    %1271 = vset.pattern.permute.xlu0 0
    %1272 = vperm.xlu0 %1271, %v1171
    %v1273 = vpop.permute.xlu0 %1272
    %1274 = vset.pattern.permute.xlu0 0
    %1275 = vperm.xlu0 %1274, %v1180
    %v1276 = vpop.permute.xlu0 %1275
    %v1277 = vlaneseq
    %v1278 = vand.u32 %v1277, 127
    %v1279 = vperm.slane %v1183, %v1278
    %v1280 = vadd.s32 %v1278, 4294967288
    %v1281 = vperm.slane %v1186, %v1280
    %vm1282 = vcmask 130112
    %v1283 = vsel %vm1282, %v1281, %v1279
    %v1284 = vadd.s32 %v1278, 4294967280
    %v1285 = vperm.slane %v1189, %v1284
    %vm1286 = vcmask 195712
    %v1287 = vsel %vm1286, %v1285, %v1283
    %v1288 = vadd.s32 %v1278, 4294967272
    %v1289 = vperm.slane %v1192, %v1288
    %vm1290 = vcmask 261312
    %v1291 = vsel %vm1290, %v1289, %v1287
    %v1292 = vadd.s32 %v1278, 4294967264
    %v1293 = vperm.slane %v1195, %v1292
    %vm1294 = vcmask 326912
    %v1295 = vsel %vm1294, %v1293, %v1291
    %v1296 = vadd.s32 %v1278, 4294967256
    %v1297 = vperm.slane %v1198, %v1296
    %vm1298 = vcmask 392512
    %v1299 = vsel %vm1298, %v1297, %v1295
    %v1300 = vadd.s32 %v1278, 4294967248
    %v1301 = vperm.slane %v1201, %v1300
    %vm1302 = vcmask 458112
    %v1303 = vsel %vm1302, %v1301, %v1299
    %v1304 = vadd.s32 %v1278, 4294967240
    %v1305 = vperm.slane %v1204, %v1304
    %vm1306 = vcmask 523712
    %v1307 = vsel %vm1306, %v1305, %v1303
    %v1308 = vadd.s32 %v1278, 4294967232
    %v1309 = vperm.slane %v1207, %v1308
    %vm1310 = vcmask 589312
    %v1311 = vsel %vm1310, %v1309, %v1307
    %v1312 = vadd.s32 %v1278, 4294967224
    %v1313 = vperm.slane %v1210, %v1312
    %vm1314 = vcmask 654912
    %v1315 = vsel %vm1314, %v1313, %v1311
    %v1316 = vadd.s32 %v1278, 4294967216
    %v1317 = vperm.slane %v1213, %v1316
    %vm1318 = vcmask 720512
    %v1319 = vsel %vm1318, %v1317, %v1315
    %v1320 = vadd.s32 %v1278, 4294967208
    %v1321 = vperm.slane %v1216, %v1320
    %vm1322 = vcmask 786112
    %v1323 = vsel %vm1322, %v1321, %v1319
    %v1324 = vadd.s32 %v1278, 4294967200
    %v1325 = vperm.slane %v1219, %v1324
    %vm1326 = vcmask 851712
    %v1327 = vsel %vm1326, %v1325, %v1323
    %v1328 = vadd.s32 %v1278, 4294967192
    %v1329 = vperm.slane %v1222, %v1328
    %vm1330 = vcmask 917312
    %v1331 = vsel %vm1330, %v1329, %v1327
    %v1332 = vadd.s32 %v1278, 4294967184
    %v1333 = vperm.slane %v1225, %v1332
    %vm1334 = vcmask 982912
    %v1335 = vsel %vm1334, %v1333, %v1331
    %v1336 = vadd.s32 %v1278, 4294967176
    %v1337 = vperm.slane %v1228, %v1336
    %vm1338 = vcmask 1048512
    %v1339 = vsel %vm1338, %v1337, %v1335
    %v1340 = vperm.slane %v1231, %v1278
    %v1341 = vperm.slane %v1234, %v1280
    %v1342 = vsel %vm1282, %v1341, %v1340
    %v1343 = vperm.slane %v1237, %v1284
    %v1344 = vsel %vm1286, %v1343, %v1342
    %v1345 = vperm.slane %v1240, %v1288
    %v1346 = vsel %vm1290, %v1345, %v1344
    %v1347 = vperm.slane %v1243, %v1292
    %v1348 = vsel %vm1294, %v1347, %v1346
    %v1349 = vperm.slane %v1246, %v1296
    %v1350 = vsel %vm1298, %v1349, %v1348
    %v1351 = vperm.slane %v1249, %v1300
    %v1352 = vsel %vm1302, %v1351, %v1350
    %v1353 = vperm.slane %v1252, %v1304
    %v1354 = vsel %vm1306, %v1353, %v1352
    %v1355 = vperm.slane %v1255, %v1308
    %v1356 = vsel %vm1310, %v1355, %v1354
    %v1357 = vperm.slane %v1258, %v1312
    %v1358 = vsel %vm1314, %v1357, %v1356
    %v1359 = vperm.slane %v1261, %v1316
    %v1360 = vsel %vm1318, %v1359, %v1358
    %v1361 = vperm.slane %v1264, %v1320
    %v1362 = vsel %vm1322, %v1361, %v1360
    %v1363 = vperm.slane %v1267, %v1324
    %v1364 = vsel %vm1326, %v1363, %v1362
    %v1365 = vperm.slane %v1270, %v1328
    %v1366 = vsel %vm1330, %v1365, %v1364
    %v1367 = vperm.slane %v1273, %v1332
    %v1368 = vsel %vm1334, %v1367, %v1366
    %v1369 = vperm.slane %v1276, %v1336
    %v1370 = vsel %vm1338, %v1369, %v1368
    %v1371 = vrot.slane %v1370, 7
    %vm1372 = vcmask 1040384
    %v1373 = vsel %vm1372, %v1339, %v1371
    %v1375 = vlaneseq
    %vm1376 = vcmp.ge.s32.totalorder %v1375, 0
    %vm1377 = vcmp.lt.s32.totalorder %v1375, 256
    %vm1378 = vmand %vm1376, %vm1377
    %1379 = vst.msk [vmem:[#allocation3] sm:$0x3] %vm1378, %v1373
    // Predicated region
    $region22: #{tpu_custom_call.1} parent=1 // pred_check
      _
    $region23: #{tpu_custom_call.1} parent=1 // pred_check_branch
      %1381 = sbr.rel (0) target = $region25
    $region24: #{tpu_custom_call.1} parent=1 // pred_region
      %1383 = vsyncadd [#allocation4], 0
      %s1385 = sshll.u32 [#allocation3], 4
      %s1386 = int_to_ptr.vmem [resolvable:$true] %s1385
      %s1387 = sshll.u32 %s5, 4
      %s1388 = int_to_ptr.hbm [resolvable:$true] %s1387
      %1390 = dma.vmem_to_hbm [thread:$0]  %s1386, 32, %s1388, [#allocation4]
    $region25: #{tpu_custom_call.1} parent=1 // pred_fallthru
      _
    // Predicated region
    $region26: #{tpu_custom_call.1} parent=1 // pred_check
      _
    $region27: #{tpu_custom_call.1} parent=1 // pred_check_branch
      %1392 = sbr.rel (0) target = $region29
    $region28: #{tpu_custom_call.1} parent=1 // pred_region
      %1394 = dma.done [#allocation4], 32
    $region29: #{tpu_custom_call.1} parent=1 // pred_fallthru
      _
    %1395 = vsyncpa [#allocation4], 1

</llo_original>
